<compile_context>
chip_gen: v6e
topology: v6e:2x2x1
jax: 0.10.0
libtpu: 0.0.40
codegen_flags: <defaults>
</compile_context>

<pallas_src>
import functools

import numpy as np
import jax
import jax.numpy as jnp
from jax.experimental import pallas as pl
from jax.experimental.pallas import tpu as pltpu


def _round_up(a, m):
    return (a + m - 1) // m * m


def _mha_kernel(tile_map_ref,
                q_ref, kv_ref, mm_ref, we_ref, be_ref, ea_ref, src_ref, dst_ref,
                out_ref,
                acc_ref,
                *, node_tile, hd_pad, chunk_n):
    """Grid = (edge-tile steps,), "arbitrary" (dst-sorted groups, sequential accumulation).

    Scalar prefetch: tile_map [n_steps] int32 — destination node tile of each edge-tile step.
    Per-step operands: q [tN, HD_pad] bf16 (local node tile), ea/src/dst [tE, 1].
    Resident operands: kv = K|V [N_pad, 2*HD_pad] bf16, MM [HD_pad, HD_pad] f32 (per-head pool
    with 1/sqrt(d) folded in), We/be [1, HD_pad] f32.
    Scratch: acc [tN, 2*HD_pad] f32 = fused wV | Z accumulator.
    Output block: [tN, HD_pad] f32, written on the last edge tile of each group.
    """
    et = pl.program_id(0)
    n_steps = pl.num_programs(0)

    my_tile = tile_map_ref[et]
    prev_tile = tile_map_ref[jnp.maximum(et - 1, 0)]
    next_tile = tile_map_ref[jnp.minimum(et + 1, n_steps - 1)]
    is_first = jnp.logical_or(et == 0, prev_tile != my_tile)
    is_last = jnp.logical_or(et == n_steps - 1, next_tile != my_tile)

    @pl.when(is_first)
    def _init():
        acc_ref[...] = jnp.zeros_like(acc_ref)

    src = src_ref[...]                       # [tE, 1] int32 (sentinel == N_pad on padded edges)
    dst = dst_ref[...]                       # [tE, 1] int32
    t_e = src.shape[0]
    n_pad = kv_ref.shape[0]

    # --- local destination one-hot (exact in bf16) ---------------------------------
    node_off = my_tile * node_tile
    iota_loc = jax.lax.broadcasted_iota(jnp.int32, (t_e, node_tile), 1) + node_off
    sdst_loc = (iota_loc == dst).astype(jnp.bfloat16)                  # [tE, tN]

    # --- Q gathered from the local node tile only -----------------------------------
    qdst = jnp.dot(sdst_loc, q_ref[...], preferred_element_type=jnp.float32)   # [tE, HD]

    # --- chunked src-gather from the fused K|V (bf16 MXU operands, f32 accumulation) -
    def gather_at(off, acc):
        iota_c = jax.lax.broadcasted_iota(jnp.int32, (t_e, chunk_n), 1) + off
        ssrc = (iota_c == src).astype(jnp.bfloat16)                    # [tE, chunk]
        kv_c = kv_ref[pl.ds(off, chunk_n), :]                          # [chunk, 2*HD]
        return acc + jnp.dot(ssrc, kv_c, preferred_element_type=jnp.float32)

    n_chunks = n_pad // chunk_n
    zeros = jnp.zeros((t_e, 2 * hd_pad), jnp.float32)
    if n_chunks == 1:
        kv_gather = gather_at(0, zeros)
    else:
        kv_gather = jax.lax.fori_loop(
            0, n_chunks,
            lambda c, acc: gather_at(pl.multiple_of(c * chunk_n, chunk_n), acc),
            zeros)
    ksrc = kv_gather[:, :hd_pad]                                       # [tE, HD]
    vsrc = kv_gather[:, hd_pad:]                                       # [tE, HD]

    # --- edge-feature projection on the VPU (in_dim_edges == 1) ---------------------
    eh = ea_ref[...] * we_ref[...] + be_ref[...]                       # [tE, HD]

    # --- score: per-head reduction via block-diagonal MM (1/sqrt(d) folded in) ------
    score_elem = ksrc * qdst * eh                                      # [tE, HD] f32
    head_sum = jnp.dot(score_elem, mm_ref[...], preferred_element_type=jnp.float32)
    score = jnp.exp(jnp.clip(head_sum, -5.0, 5.0))                     # [tE, HD]
    msg = vsrc * score                                                 # [tE, HD]

    # --- fused scatter-add into this node tile (one 256-wide MXU op) -----------------
    scatter_rhs = jnp.concatenate([msg, score], axis=1).astype(jnp.bfloat16)   # [tE, 2*HD]
    acc_ref[...] += jax.lax.dot_general(
        sdst_loc, scatter_rhs, (((0,), (0,)), ((), ())),
        preferred_element_type=jnp.float32)

    @pl.when(is_last)
    def _finalize():
        wv = acc_ref[:, :hd_pad]
        z = acc_ref[:, hd_pad:2 * hd_pad]
        out_ref[...] = wv / (z + 1e-6)


def multi_head_attention_pallas(x, edge_index, edge_attr, params, *,
                                num_heads, out_dim,
                                edge_tile=512, node_tile=256, gather_chunk=512):
    N, in_dim = x.shape
    E = int(edge_attr.shape[0])
    HD = num_heads * out_dim
    f32, bf16 = jnp.float32, jnp.bfloat16

    HD_pad = _round_up(HD, 128)
    tN = _round_up(min(node_tile, _round_up(N, 8)), 8)
    N_pad = _round_up(N, tN)
    if N_pad <= gather_chunk:
        chunk_n = N_pad
    else:
        chunk_n = _round_up(gather_chunk, tN)        # multiple of tN (hence of 8)
        N_pad = _round_up(N_pad, chunk_n)            # still a multiple of tN
    n_nt = N_pad // tN
    tE = _round_up(min(edge_tile, _round_up(max(E, 1), 8)), 8)

    # ---- node / edge projections hoisted out of the kernel (plain XLA, done once) ----
    xf = x.astype(f32)
    Qh = xf @ params["Wq"].astype(f32) + params["bq"].astype(f32).reshape(1, HD)
    Kh = xf @ params["Wk"].astype(f32) + params["bk"].astype(f32).reshape(1, HD)
    Vh = xf @ params["Wv"].astype(f32) + params["bv"].astype(f32).reshape(1, HD)

    def pad_nodes(a):
        return jnp.zeros((N_pad, HD_pad), f32).at[:N, :HD].set(a)

    Q_p = pad_nodes(Qh).astype(bf16)                                       # [N_pad, HD_pad]
    KV_p = jnp.concatenate([pad_nodes(Kh), pad_nodes(Vh)], axis=1).astype(bf16)  # [N_pad, 2*HD_pad]

    We_p = jnp.zeros((1, HD_pad), f32).at[:, :HD].set(params["We"].astype(f32).reshape(1, HD))
    be_p = jnp.zeros((1, HD_pad), f32).at[:, :HD].set(params["be"].astype(f32).reshape(1, HD))

    # Block-diagonal per-head pooling matrix with 1/sqrt(out_dim) folded in.
    head_id = np.arange(HD) // out_dim
    mm_np = (head_id[:, None] == head_id[None, :]).astype(np.float32) / np.sqrt(out_dim)
    MM = jnp.zeros((HD_pad, HD_pad), f32).at[:HD, :HD].set(jnp.asarray(mm_np))

    # ---- host-side edge grouping by destination node tile (scalar-prefetch pattern) ----
    ei_np = np.asarray(edge_index)
    src_np = ei_np[0].astype(np.int32)
    dst_np = ei_np[1].astype(np.int32)
    ea_np = np.asarray(edge_attr, dtype=np.float32).reshape(E)
    tile_of_edge = dst_np // tN
    order = np.argsort(tile_of_edge, kind="stable")
    src_s, dst_s, ea_s = src_np[order], dst_np[order], ea_np[order]
    counts = np.bincount(tile_of_edge, minlength=n_nt).astype(np.int64)

    tiles_per_group = np.maximum(1, -(-counts // tE))     # >=1 tile per node tile (zero-edge tiles too)
    n_steps = int(tiles_per_group.sum())

    SENT = N_pad   # sentinel index: matches no node -> all-zero one-hot rows, contributes exactly 0
    src_g = np.full((n_steps * tE,), SENT, np.int32)
    dst_g = np.full((n_steps * tE,), SENT, np.int32)
    ea_g = np.zeros((n_steps * tE,), np.float32)
    tile_map = np.zeros((n_steps,), np.int32)
    e_ptr, t_ptr = 0, 0
    for nt in range(n_nt):
        c = int(counts[nt])
        t = int(tiles_per_group[nt])
        base = t_ptr * tE
        src_g[base:base + c] = src_s[e_ptr:e_ptr + c]
        dst_g[base:base + c] = dst_s[e_ptr:e_ptr + c]
        ea_g[base:base + c] = ea_s[e_ptr:e_ptr + c]
        tile_map[t_ptr:t_ptr + t] = nt
        e_ptr += c
        t_ptr += t

    src_g = jnp.asarray(src_g).reshape(-1, 1)
    dst_g = jnp.asarray(dst_g).reshape(-1, 1)
    ea_g = jnp.asarray(ea_g).reshape(-1, 1)
    tile_map = jnp.asarray(tile_map)

    # ---- specs ----
    const = lambda et, tm: (0, 0)
    edge_map = lambda et, tm: (et, 0)
    group_map = lambda et, tm: (tm[et], 0)

    in_specs = [
        pl.BlockSpec((tN, HD_pad), group_map),         # Q (local node tile, bf16)
        pl.BlockSpec((N_pad, 2 * HD_pad), const),      # fused K|V (resident, bf16)
        pl.BlockSpec((HD_pad, HD_pad), const),         # MM per-head pooling (f32)
        pl.BlockSpec((1, HD_pad), const),              # We
        pl.BlockSpec((1, HD_pad), const),              # be
        pl.BlockSpec((tE, 1), edge_map),               # edge_attr (grouped)
        pl.BlockSpec((tE, 1), edge_map),               # src indices (grouped)
        pl.BlockSpec((tE, 1), edge_map),               # dst indices (grouped)
    ]
    out_spec = pl.BlockSpec((tN, HD_pad), group_map)
    scratch = [pltpu.VMEM((tN, 2 * HD_pad), jnp.float32)]   # fused wV | Z accumulator

    flops = 2 * n_steps * tE * (N_pad * 2 * HD_pad      # chunked src gather
                                + tN * HD_pad           # local Q gather
                                + HD_pad * HD_pad       # per-head pooling
                                + tN * 2 * HD_pad)      # fused scatter-add
    bytes_accessed = int(KV_p.size * 2 + n_steps * tN * HD_pad * 2 + MM.size * 4
                         + 2 * HD_pad * 4 + n_steps * tE * 12 + N_pad * HD_pad * 4)
    cost = pl.CostEstimate(flops=int(flops),
                           transcendentals=int(n_steps * tE * HD_pad),
                           bytes_accessed=bytes_accessed)

    kernel = functools.partial(_mha_kernel, node_tile=tN, hd_pad=HD_pad, chunk_n=chunk_n)

    out_p = pl.pallas_call(
        kernel,
        out_shape=jax.ShapeDtypeStruct((N_pad, HD_pad), f32),
        grid_spec=pltpu.PrefetchScalarGridSpec(
            num_scalar_prefetch=1,
            grid=(n_steps,),
            in_specs=in_specs,
            out_specs=out_spec,
            scratch_shapes=scratch),
        compiler_params=pltpu.CompilerParams(
            dimension_semantics=("arbitrary",),
            # 48 MiB: above the 32 MiB default on v6e, with headroom under v7x's 64 MiB/TC.
            vmem_limit_bytes=48 * 1024 * 1024),
        cost_estimate=cost,
    )(tile_map, Q_p, KV_p, MM, We_p, be_p, ea_g, src_g, dst_g)

    return out_p[:N, :HD].reshape(N, num_heads, out_dim)


def multi_head_attention_ref(x, edge_index, edge_attr, params, *, num_heads, out_dim):
    """Pure-JAX f32 reference mirroring the PyTorch forward exactly."""
    N = x.shape[0]
    Qh = (x @ params["Wq"] + params["bq"]).reshape(N, num_heads, out_dim)
    Kh = (x @ params["Wk"] + params["bk"]).reshape(N, num_heads, out_dim)
    Vh = (x @ params["Wv"] + params["bv"]).reshape(N, num_heads, out_dim)
    Eh = (edge_attr @ params["We"] + params["be"]).reshape(-1, num_heads, out_dim)
    src, dst = edge_index[0], edge_index[1]
    score = Kh[src] * Qh[dst] / np.sqrt(out_dim) * Eh
    score = jnp.exp(jnp.clip(score.sum(-1, keepdims=True), -5.0, 5.0))   # [E, H, 1]
    msg = Vh[src] * score
    wV = jnp.zeros_like(Vh).at[dst].add(msg)
    Z = jnp.zeros((N, num_heads, 1), jnp.float32).at[dst].add(score)
    return wV / (Z + 1e-6)


if __name__ == "__main__":
    # Small, deterministic synthetic graph — sized to exercise edge grouping (multiple edge
    # tiles per node tile), padding with sentinel edges, and the chunked src gather.
    N, E_EDGES = 24, 40
    IN_DIM, OUT_DIM, NUM_HEADS = 16, 8, 4
    HD = OUT_DIM * NUM_HEADS

    key = jax.random.PRNGKey(0)
    ks = jax.random.split(key, 12)

    x = jax.random.normal(ks[0], (N, IN_DIM), jnp.float32)
    edge_attr = jax.random.normal(ks[1], (E_EDGES, 1), jnp.float32)
    src = jax.random.randint(ks[2], (E_EDGES,), 0, N)
    dst = jax.random.randint(ks[3], (E_EDGES,), 0, N)
    edge_index = jnp.stack([src, dst])  # [2, E]

    s = 0.1
    params = {
        "Wq": s * jax.random.normal(ks[4], (IN_DIM, HD), jnp.float32),
        "bq": s * jax.random.normal(ks[5], (1, HD), jnp.float32),
        "Wk": s * jax.random.normal(ks[6], (IN_DIM, HD), jnp.float32),
        "bk": s * jax.random.normal(ks[7], (1, HD), jnp.float32),
        "Wv": s * jax.random.normal(ks[8], (IN_DIM, HD), jnp.float32),
        "bv": s * jax.random.normal(ks[9], (1, HD), jnp.float32),
        "We": s * jax.random.normal(ks[10], (1, HD), jnp.float32),
        "be": s * jax.random.normal(ks[11], (1, HD), jnp.float32),
    }

    out = multi_head_attention_pallas(
        x, edge_index, edge_attr, params, num_heads=NUM_HEADS, out_dim=OUT_DIM,
        edge_tile=8, node_tile=8, gather_chunk=8)   # 3 node tiles, multi-tile groups, 3 gather chunks
    out = jax.block_until_ready(out)

    ref = multi_head_attention_ref(
        x, edge_index, edge_attr, params, num_heads=NUM_HEADS, out_dim=OUT_DIM)
    ref = jax.block_until_ready(ref)

    assert out.shape == (N, NUM_HEADS, OUT_DIM)
    # bf16 MXU operands -> relaxed tolerance vs the f32 reference.
    assert np.allclose(np.asarray(out), np.asarray(ref), rtol=2e-2, atol=2e-2), (
        "Pallas output does not match reference")

    print("KERNEL_OK")
</pallas_src>

<mosaic_0001>
module attributes {stable_mosaic.version = 11 : i64} {
  func.func @_mha_kernel(%arg0: i32, %arg1: memref<7xi32, #tpu.memory_space<smem>>, %arg2: memref<8x128xbf16, #tpu.memory_space<vmem>>, %arg3: memref<24x256xbf16, #tpu.memory_space<vmem>>, %arg4: memref<128x128xf32, #tpu.memory_space<vmem>>, %arg5: memref<1x128xf32, #tpu.memory_space<vmem>>, %arg6: memref<1x128xf32, #tpu.memory_space<vmem>>, %arg7: memref<8x1xf32, #tpu.memory_space<vmem>>, %arg8: memref<8x1xi32, #tpu.memory_space<vmem>>, %arg9: memref<8x1xi32, #tpu.memory_space<vmem>>, %arg10: memref<8x128xf32, #tpu.memory_space<vmem>>, %arg11: memref<8x256xf32, #tpu.memory_space<vmem>>) attributes {dimension_semantics = [#tpu.dimension_semantics<arbitrary>], iteration_bounds = array<i64: 7>, scalar_prefetch = 1 : i64, scratch_operands = 1 : i64, tpu.core_type = #tpu.core_type<tc>, window_params = [{transform_indices = @transform_0, window_bounds = array<i64: 8, 128>}, {pipeline_mode = #tpu.pipeline_mode<synchronous>, transform_indices = @transform_1, window_bounds = array<i64: 24, 256>}, {pipeline_mode = #tpu.pipeline_mode<synchronous>, transform_indices = @transform_2, window_bounds = array<i64: 128, 128>}, {pipeline_mode = #tpu.pipeline_mode<synchronous>, transform_indices = @transform_3, window_bounds = array<i64: 1, 128>}, {pipeline_mode = #tpu.pipeline_mode<synchronous>, transform_indices = @transform_4, window_bounds = array<i64: 1, 128>}, {transform_indices = @transform_5, window_bounds = array<i64: 8, 1>}, {transform_indices = @transform_6, window_bounds = array<i64: 8, 1>}, {transform_indices = @transform_7, window_bounds = array<i64: 8, 1>}, {transform_indices = @transform_8, window_bounds = array<i64: 8, 128>}]} {
    %0 = arith.index_cast %arg0 : i32 to index
    %1 = memref.load %arg1[%0] : memref<7xi32, #tpu.memory_space<smem>>
    %c1_i32 = arith.constant 1 : i32
    %2 = arith.subi %arg0, %c1_i32 : i32
    %c0_i32 = arith.constant 0 : i32
    %3 = arith.maxsi %2, %c0_i32 : i32
    %4 = arith.index_cast %3 : i32 to index
    %5 = memref.load %arg1[%4] : memref<7xi32, #tpu.memory_space<smem>>
    %c1_i32_0 = arith.constant 1 : i32
    %6 = arith.addi %arg0, %c1_i32_0 : i32
    %c6_i32 = arith.constant 6 : i32
    %7 = arith.minsi %6, %c6_i32 : i32
    %8 = arith.index_cast %7 : i32 to index
    %9 = memref.load %arg1[%8] : memref<7xi32, #tpu.memory_space<smem>>
    %c0_i32_1 = arith.constant 0 : i32
    %10 = arith.cmpi eq, %arg0, %c0_i32_1 : i32
    %11 = arith.cmpi ne, %5, %1 : i32
    %12 = arith.ori %10, %11 : i1
    %c6_i32_2 = arith.constant 6 : i32
    %13 = arith.cmpi eq, %arg0, %c6_i32_2 : i32
    %14 = arith.cmpi ne, %9, %1 : i32
    %15 = arith.ori %13, %14 : i1
    %16 = arith.extui %12 : i1 to i32
    %c0_i32_3 = arith.constant 0 : i32
    %17 = arith.cmpi ne, %16, %c0_i32_3 : i32
    scf.if %17 {
      %cst_30 = arith.constant 0.000000e+00 : f32
      %62 = vector.broadcast %cst_30 : f32 to vector<8x256xf32>
      %c0_31 = arith.constant 0 : index
      %c0_32 = arith.constant 0 : index
      %63 = vector.load %arg11[%c0_31, %c0_32] : memref<8x256xf32, #tpu.memory_space<vmem>>, vector<8x256xf32>
      tpu.vector_store %arg11[%c0_31, %c0_32], %62 {strides = array<i32>} : memref<8x256xf32, #tpu.memory_space<vmem>>, vector<8x256xf32>,
    } else {
    }
    %c0 = arith.constant 0 : index
    %c0_4 = arith.constant 0 : index
    %18 = vector.load %arg8[%c0, %c0_4] : memref<8x1xi32, #tpu.memory_space<vmem>>, vector<8x1xi32>
    %c0_5 = arith.constant 0 : index
    %c0_6 = arith.constant 0 : index
    %19 = vector.load %arg9[%c0_5, %c0_6] : memref<8x1xi32, #tpu.memory_space<vmem>>, vector<8x1xi32>
    %c8_i32 = arith.constant 8 : i32
    %20 = arith.muli %1, %c8_i32 : i32
    %21 = tpu.iota {dimensions = array<i32: 1>} : vector<8x8xi32>
    %22 = vector.broadcast %20 : i32 to vector<8x8xi32>
    %23 = arith.addi %21, %22 : vector<8x8xi32>
    %24 = vector.broadcast %19 : vector<8x1xi32> to vector<8x8xi32>
    %25 = arith.cmpi eq, %23, %24 : vector<8x8xi32>
    %26 = arith.extui %25 : vector<8x8xi1> to vector<8x8xi32>
    %27 = arith.sitofp %26 : vector<8x8xi32> to vector<8x8xf32>
    %28 = arith.truncf %27 : vector<8x8xf32> to vector<8x8xbf16>
    %c0_7 = arith.constant 0 : index
    %c0_8 = arith.constant 0 : index
    %29 = vector.load %arg2[%c0_7, %c0_8] : memref<8x128xbf16, #tpu.memory_space<vmem>>, vector<8x128xbf16>
    %cst = arith.constant dense<0.000000e+00> : vector<8x128xf32>
    %30 = tpu.matmul %28, %29, %cst {dimension_numbers = #tpu.dot_dimension_numbers<[1], [0], [0], [1], [0, 0, 1, 1], [], []>} : vector<8x8xbf16>, vector<8x128xbf16>, vector<8x128xf32> -> vector<8x128xf32>
    %cst_9 = arith.constant 0.000000e+00 : f32
    %31 = vector.broadcast %cst_9 : f32 to vector<8x256xf32>
    %c0_i32_10 = arith.constant 0 : i32
    %c3_i32 = arith.constant 3 : i32
    %32 = arith.addi %c0_i32_10, %c3_i32 : i32
    %c1_i32_11 = arith.constant 1 : i32
    %33 = scf.for %arg12 = %c0_i32_10 to %32 step %c1_i32_11 iter_args(%arg13 = %31) -> (vector<8x256xf32>)  : i32 {
      %c8_i32_30 = arith.constant 8 : i32
      %62 = arith.muli %arg12, %c8_i32_30 : i32
      %63 = tpu.assume_multiple %62, 8 : i32
      %64 = tpu.iota {dimensions = array<i32: 1>} : vector<8x8xi32>
      %65 = vector.broadcast %63 : i32 to vector<8x8xi32>
      %66 = arith.addi %64, %65 : vector<8x8xi32>
      %67 = vector.broadcast %18 : vector<8x1xi32> to vector<8x8xi32>
      %68 = arith.cmpi eq, %66, %67 : vector<8x8xi32>
      %69 = arith.extui %68 : vector<8x8xi1> to vector<8x8xi32>
      %70 = arith.sitofp %69 : vector<8x8xi32> to vector<8x8xf32>
      %71 = arith.truncf %70 : vector<8x8xf32> to vector<8x8xbf16>
      %72 = arith.index_cast %63 : i32 to index
      %c0_31 = arith.constant 0 : index
      %73 = vector.load %arg3[%72, %c0_31] : memref<24x256xbf16, #tpu.memory_space<vmem>>, vector<8x256xbf16>
      %cst_32 = arith.constant dense<0.000000e+00> : vector<8x256xf32>
      %74 = tpu.matmul %71, %73, %cst_32 {dimension_numbers = #tpu.dot_dimension_numbers<[1], [0], [0], [1], [0, 0, 1, 1], [], []>} : vector<8x8xbf16>, vector<8x256xbf16>, vector<8x256xf32> -> vector<8x256xf32>
      %75 = arith.addf %arg13, %74 : vector<8x256xf32>
      scf.yield %75 : vector<8x256xf32>
    }
    %c3_i32_12 = arith.constant 3 : i32
    %34 = vector.extract_strided_slice %33 {offsets = [0, 0], sizes = [8, 128], strides = [1, 1]} : vector<8x256xf32> to vector<8x128xf32>
    %35 = vector.extract_strided_slice %33 {offsets = [0, 128], sizes = [8, 128], strides = [1, 1]} : vector<8x256xf32> to vector<8x128xf32>
    %c0_13 = arith.constant 0 : index
    %c0_14 = arith.constant 0 : index
    %36 = vector.load %arg7[%c0_13, %c0_14] : memref<8x1xf32, #tpu.memory_space<vmem>>, vector<8x1xf32>
    %c0_15 = arith.constant 0 : index
    %c0_16 = arith.constant 0 : index
    %37 = vector.load %arg5[%c0_15, %c0_16] : memref<1x128xf32, #tpu.memory_space<vmem>>, vector<1x128xf32>
    %38 = vector.broadcast %36 : vector<8x1xf32> to vector<8x128xf32>
    %39 = vector.broadcast %37 : vector<1x128xf32> to vector<8x128xf32>
    %40 = arith.mulf %38, %39 : vector<8x128xf32>
    %c0_17 = arith.constant 0 : index
    %c0_18 = arith.constant 0 : index
    %41 = vector.load %arg6[%c0_17, %c0_18] : memref<1x128xf32, #tpu.memory_space<vmem>>, vector<1x128xf32>
    %42 = vector.broadcast %41 : vector<1x128xf32> to vector<8x128xf32>
    %43 = arith.addf %40, %42 : vector<8x128xf32>
    %44 = arith.mulf %34, %30 : vector<8x128xf32>
    %45 = arith.mulf %44, %43 : vector<8x128xf32>
    %c0_19 = arith.constant 0 : index
    %c0_20 = arith.constant 0 : index
    %46 = vector.load %arg4[%c0_19, %c0_20] : memref<128x128xf32, #tpu.memory_space<vmem>>, vector<128x128xf32>
    %cst_21 = arith.constant dense<0.000000e+00> : vector<8x128xf32>
    %47 = tpu.matmul %45, %46, %cst_21 {dimension_numbers = #tpu.dot_dimension_numbers<[1], [0], [0], [1], [0, 0, 1, 1], [], []>} : vector<8x128xf32>, vector<128x128xf32>, vector<8x128xf32> -> vector<8x128xf32>
    %cst_22 = arith.constant -5.000000e+00 : f32
    %cst_23 = arith.constant 5.000000e+00 : f32
    %48 = vector.broadcast %cst_22 : f32 to vector<8x128xf32>
    %49 = arith.maximumf %48, %47 : vector<8x128xf32>
    %50 = vector.broadcast %cst_23 : f32 to vector<8x128xf32>
    %51 = arith.minimumf %50, %49 : vector<8x128xf32>
    %52 = math.exp %51 : vector<8x128xf32>
    %53 = arith.mulf %35, %52 : vector<8x128xf32>
    %54 = tpu.concatenate %53, %52 in 1 : vector<8x128xf32>, vector<8x128xf32> -> vector<8x256xf32>
    %55 = arith.truncf %54 : vector<8x256xf32> to vector<8x256xbf16>
    %c0_24 = arith.constant 0 : index
    %c0_25 = arith.constant 0 : index
    %56 = vector.load %arg11[%c0_24, %c0_25] : memref<8x256xf32, #tpu.memory_space<vmem>>, vector<8x256xf32>
    %cst_26 = arith.constant dense<0.000000e+00> : vector<8x256xf32>
    %57 = tpu.matmul %28, %55, %cst_26 {dimension_numbers = #tpu.dot_dimension_numbers<[0], [0], [1], [1], [0, 1, 1, 1], [], []>} : vector<8x8xbf16>, vector<8x256xbf16>, vector<8x256xf32> -> vector<8x256xf32>
    %58 = arith.addf %56, %57 : vector<8x256xf32>
    %c0_27 = arith.constant 0 : index
    %c0_28 = arith.constant 0 : index
    %59 = vector.load %arg11[%c0_27, %c0_28] : memref<8x256xf32, #tpu.memory_space<vmem>>, vector<8x256xf32>
    tpu.vector_store %arg11[%c0_27, %c0_28], %58 {strides = array<i32>} : memref<8x256xf32, #tpu.memory_space<vmem>>, vector<8x256xf32>,
    %60 = arith.extui %15 : i1 to i32
    %c0_i32_29 = arith.constant 0 : i32
    %61 = arith.cmpi ne, %60, %c0_i32_29 : i32
    scf.if %61 {
      %c0_30 = arith.constant 0 : index
      %c0_31 = arith.constant 0 : index
      %62 = vector.load %arg11[%c0_30, %c0_31] : memref<8x256xf32, #tpu.memory_space<vmem>>, vector<8x128xf32>
      %c0_32 = arith.constant 0 : index
      %c128 = arith.constant 128 : index
      %63 = vector.load %arg11[%c0_32, %c128] : memref<8x256xf32, #tpu.memory_space<vmem>>, vector<8x128xf32>
      %cst_33 = arith.constant 9.99999997E-7 : f32
      %64 = vector.broadcast %cst_33 : f32 to vector<8x128xf32>
      %65 = arith.addf %63, %64 : vector<8x128xf32>
      %66 = arith.divf %62, %65 : vector<8x128xf32>
      %c0_34 = arith.constant 0 : index
      %c0_35 = arith.constant 0 : index
      %67 = vector.load %arg10[%c0_34, %c0_35] : memref<8x128xf32, #tpu.memory_space<vmem>>, vector<8x128xf32>
      tpu.vector_store %arg10[%c0_34, %c0_35], %66 {strides = array<i32>} : memref<8x128xf32, #tpu.memory_space<vmem>>, vector<8x128xf32>,
    } else {
    }
    return
  }
  func.func @transform_0(%arg0: i32, %arg1: memref<7xi32, #tpu.memory_space<smem>>) -> (i32, i32) {
    %0 = arith.index_cast %arg0 : i32 to index
    %1 = memref.load %arg1[%0] : memref<7xi32, #tpu.memory_space<smem>>
    %c0_i32 = arith.constant 0 : i32
    %c0_i32_0 = arith.constant 0 : i32
    return %1, %c0_i32 : i32, i32
  }
  func.func @transform_1(%arg0: i32, %arg1: memref<7xi32, #tpu.memory_space<smem>>) -> (i32, i32) {
    %c0_i32 = arith.constant 0 : i32
    %c0_i32_0 = arith.constant 0 : i32
    %c0_i32_1 = arith.constant 0 : i32
    return %c0_i32, %c0_i32_0 : i32, i32
  }
  func.func @transform_2(%arg0: i32, %arg1: memref<7xi32, #tpu.memory_space<smem>>) -> (i32, i32) {
    %c0_i32 = arith.constant 0 : i32
    %c0_i32_0 = arith.constant 0 : i32
    %c0_i32_1 = arith.constant 0 : i32
    return %c0_i32, %c0_i32_0 : i32, i32
  }
  func.func @transform_3(%arg0: i32, %arg1: memref<7xi32, #tpu.memory_space<smem>>) -> (i32, i32) {
    %c0_i32 = arith.constant 0 : i32
    %c0_i32_0 = arith.constant 0 : i32
    %c0_i32_1 = arith.constant 0 : i32
    return %c0_i32, %c0_i32_0 : i32, i32
  }
  func.func @transform_4(%arg0: i32, %arg1: memref<7xi32, #tpu.memory_space<smem>>) -> (i32, i32) {
    %c0_i32 = arith.constant 0 : i32
    %c0_i32_0 = arith.constant 0 : i32
    %c0_i32_1 = arith.constant 0 : i32
    return %c0_i32, %c0_i32_0 : i32, i32
  }
  func.func @transform_5(%arg0: i32, %arg1: memref<7xi32, #tpu.memory_space<smem>>) -> (i32, i32) {
    %c0_i32 = arith.constant 0 : i32
    %c0_i32_0 = arith.constant 0 : i32
    return %arg0, %c0_i32 : i32, i32
  }
  func.func @transform_6(%arg0: i32, %arg1: memref<7xi32, #tpu.memory_space<smem>>) -> (i32, i32) {
    %c0_i32 = arith.constant 0 : i32
    %c0_i32_0 = arith.constant 0 : i32
    return %arg0, %c0_i32 : i32, i32
  }
  func.func @transform_7(%arg0: i32, %arg1: memref<7xi32, #tpu.memory_space<smem>>) -> (i32, i32) {
    %c0_i32 = arith.constant 0 : i32
    %c0_i32_0 = arith.constant 0 : i32
    return %arg0, %c0_i32 : i32, i32
  }
  func.func @transform_8(%arg0: i32, %arg1: memref<7xi32, #tpu.memory_space<smem>>) -> (i32, i32) {
    %0 = arith.index_cast %arg0 : i32 to index
    %1 = memref.load %arg1[%0] : memref<7xi32, #tpu.memory_space<smem>>
    %c0_i32 = arith.constant 0 : i32
    %c0_i32_0 = arith.constant 0 : i32
    return %1, %c0_i32 : i32, i32
  }
}

</mosaic_0001>

<llo_original>
// kernel: tpu_custom_call.1
$region0: #{tpu_custom_call.1}
  #allocation0 [shape = 'u32[]', space=smem, size = 0x4, offset = 0x4, fixed_abs, tag = 'smem constant byte address 0x4 - core index']
  #allocation1 [shape = 'u32[144,128]{1,0:T(1,128)}', space=vmem, size = 0x12000, scoped, tag = 'internal scratch']
  #allocation2 [shape = 'f32[8,256]{1,0:T(8,128)}', space=vmem, size = 0x2000, scoped, tag = 'scratch operand']
  #allocation3 [shape = 's32[1]{0}', space=sflag, size = 0x4, scoped, tag = 'scoped memory for tpu_custom_call.1']
  #allocation4 [shape = 'u8[512]{0}', space=smem, size = 0x200, scoped, tag = 'prefetched SMEM operand 0']
  %s0 = inlined_call_operand.vmem [shape: s32[7], index: 0, kind: input, shape index: {}]
  %s1 = inlined_call_operand.vmem [shape: bf16[24,128], index: 1, kind: input, shape index: {}]
  %s2 = inlined_call_operand.vmem [shape: bf16[24,256], index: 2, kind: input, shape index: {}]
  %s3 = inlined_call_operand.vmem [shape: f32[128,128], index: 3, kind: input, shape index: {}]
  %s4 = inlined_call_operand.vmem [shape: f32[1,128], index: 4, kind: input, shape index: {}]
  %s5 = inlined_call_operand.vmem [shape: f32[1,128], index: 5, kind: input, shape index: {}]
  %s6 = inlined_call_operand.vmem [shape: f32[56,1], index: 6, kind: input, shape index: {}]
  %s7 = inlined_call_operand.vmem [shape: s32[56,1], index: 7, kind: input, shape index: {}]
  %s8 = inlined_call_operand.vmem [shape: s32[56,1], index: 8, kind: input, shape index: {}]
  %s9 = inlined_call_operand.hbm [shape: f32[24,128], index: 9, kind: output, shape index: {}]
  %s10 = sld [smem:[#allocation0]]
  $region80: #{tpu_custom_call.1} parent=0
    _
  %s12 = ssub.s32 1, %s10
  %s13 = scalar_select 0, %s12, %s10
  %s14 = sshll.u32 %s0, 4
  %s15 = int_to_ptr.vmem [resolvable:$true] %s14
  %17 = dma.vmem_to_smem %s15, 16, [#allocation4], [#allocation3]
  %18 = dma.done [#allocation3], 16
  %19 = sfence
  $region1: #{tpu_custom_call.1} parent=0
    #allocation5 [shape = 'u8[8192]{0}', space=vmem, size = 0x2000, scoped, tag = 'output window, operand 0']
    #allocation6 [shape = 's32[2]{0}', space=sflag, size = 0x8, scoped, tag = 'scoped memory for tpu_custom_call.1']
    %20 = vsyncpa [#allocation6], 0
    %s21 = scalar_lea.sflag [#allocation6], 1
    %22 = vsyncpa %s21, 0
    loop: start=0, step=1, limit=9
    $region2: #{tpu_custom_call.1} parent=1 // loop_pre_header
      _
    $region3: #{tpu_custom_call.1} parent=1 // loop_header
      %s24 = sphi 0, %s28
      %p25 = scmp.ge.s32.totalorder %s24, 9
      %s36 = sphi 0, %s38
      %s39 = sphi 0, %s36
      %s40 = sphi 0, %s39
      %s56 = sphi 0, %s40
      %s60 = sphi 0, %s60
      %s62 = sphi 0, %s60
      %s63 = sphi 0, %s62
      %s77 = sphi 0, %s63
      %s81 = sphi 0, %s81
      %s83 = sphi 0, %s81
      %s84 = sphi 0, %s83
      %s98 = sphi 0, %s84
      %s102 = sphi 0, %s102
      %s104 = sphi 0, %s102
      %s105 = sphi 0, %s104
      %s119 = sphi 0, %s105
      %s123 = sphi 0, %s123
      %s125 = sphi 0, %s123
      %s126 = sphi 0, %s125
      %s140 = sphi 0, %s126
      %s146 = sphi 0, %s148
      %s149 = sphi 0, %s146
      %s150 = sphi 0, %s149
      %s166 = sphi 0, %s150
      %s172 = sphi 0, %s174
      %s175 = sphi 0, %s172
      %s176 = sphi 0, %s175
      %s192 = sphi 0, %s176
      %s198 = sphi 0, %s200
      %s201 = sphi 0, %s198
      %s202 = sphi 0, %s201
      %s218 = sphi 0, %s202
      %s226 = sphi 0, %s228
      %s229 = sphi 0, %s226
      %s230 = sphi 0, %s229
      %s246 = sphi 0, %s230
    $region4: #{tpu_custom_call.1} parent=1 // loop_header_branch
      %27 = sbr.rel (%p25) target = $region8
    $region5: #{tpu_custom_call.1} parent=1 // loop_body
      %s29 = ssub.s32 %s24, 1
      %s30 = ssub.s32 %s24, 2
      %s31 = sadd.s32 %s24, 1
      %s32 = sld [smem:[#allocation4 + %s24]]
      %s33 = sld [smem:[#allocation4 + %s31]]
      %s34 = ssub.s32 %s32, %s33
      %p35 = scmp.eq.s32.totalorder %s34, 0
      %s37 = sadd.s32 %s36, 1
      %s38 = scalar_select %p35, %s36, %s37
      %p41 = pneg %p35
      %p42 = scmp.eq.s32.totalorder %s24, 6
      %p43 = por %p41, %p42
      %p44 = scmp.ne.s32.totalorder %s36, %s39
      %p45 = scmp.eq.s32.totalorder %s24, 0
      %p46 = por %p44, %p45
      %p47 = scmp.ne.s32.totalorder %s36, %s39
      %p48 = scmp.eq.s32.totalorder %s29, 6
      %p49 = por %p47, %p48
      %p50 = scmp.ne.s32.totalorder %s39, %s40
      %p51 = scmp.eq.s32.totalorder %s29, 0
      %p52 = por %p50, %p51
      %p53 = scmp.ne.s32.totalorder %s39, %s40
      %p54 = scmp.eq.s32.totalorder %s30, 6
      %p55 = por %p53, %p54
      %p57 = scmp.ne.s32.totalorder %s40, %s56
      %p58 = scmp.eq.s32.totalorder %s30, 0
      %p59 = por %p57, %p58
      %s61 = sadd.s32 %s60, 1
      %p64 = scmp.eq.s32.totalorder %s24, 6
      %p65 = scmp.ne.s32.totalorder %s60, %s62
      %p66 = scmp.eq.s32.totalorder %s24, 0
      %p67 = por %p65, %p66
      %p68 = scmp.ne.s32.totalorder %s60, %s62
      %p69 = scmp.eq.s32.totalorder %s29, 6
      %p70 = por %p68, %p69
      %p71 = scmp.ne.s32.totalorder %s62, %s63
      %p72 = scmp.eq.s32.totalorder %s29, 0
      %p73 = por %p71, %p72
      %p74 = scmp.ne.s32.totalorder %s62, %s63
      %p75 = scmp.eq.s32.totalorder %s30, 6
      %p76 = por %p74, %p75
      %p78 = scmp.ne.s32.totalorder %s63, %s77
      %p79 = scmp.eq.s32.totalorder %s30, 0
      %p80 = por %p78, %p79
      %s82 = sadd.s32 %s81, 1
      %p85 = scmp.eq.s32.totalorder %s24, 6
      %p86 = scmp.ne.s32.totalorder %s81, %s83
      %p87 = scmp.eq.s32.totalorder %s24, 0
      %p88 = por %p86, %p87
      %p89 = scmp.ne.s32.totalorder %s81, %s83
      %p90 = scmp.eq.s32.totalorder %s29, 6
      %p91 = por %p89, %p90
      %p92 = scmp.ne.s32.totalorder %s83, %s84
      %p93 = scmp.eq.s32.totalorder %s29, 0
      %p94 = por %p92, %p93
      %p95 = scmp.ne.s32.totalorder %s83, %s84
      %p96 = scmp.eq.s32.totalorder %s30, 6
      %p97 = por %p95, %p96
      %p99 = scmp.ne.s32.totalorder %s84, %s98
      %p100 = scmp.eq.s32.totalorder %s30, 0
      %p101 = por %p99, %p100
      %s103 = sadd.s32 %s102, 1
      %p106 = scmp.eq.s32.totalorder %s24, 6
      %p107 = scmp.ne.s32.totalorder %s102, %s104
      %p108 = scmp.eq.s32.totalorder %s24, 0
      %p109 = por %p107, %p108
      %p110 = scmp.ne.s32.totalorder %s102, %s104
      %p111 = scmp.eq.s32.totalorder %s29, 6
      %p112 = por %p110, %p111
      %p113 = scmp.ne.s32.totalorder %s104, %s105
      %p114 = scmp.eq.s32.totalorder %s29, 0
      %p115 = por %p113, %p114
      %p116 = scmp.ne.s32.totalorder %s104, %s105
      %p117 = scmp.eq.s32.totalorder %s30, 6
      %p118 = por %p116, %p117
      %p120 = scmp.ne.s32.totalorder %s105, %s119
      %p121 = scmp.eq.s32.totalorder %s30, 0
      %p122 = por %p120, %p121
      %s124 = sadd.s32 %s123, 1
      %p127 = scmp.eq.s32.totalorder %s24, 6
      %p128 = scmp.ne.s32.totalorder %s123, %s125
      %p129 = scmp.eq.s32.totalorder %s24, 0
      %p130 = por %p128, %p129
      %p131 = scmp.ne.s32.totalorder %s123, %s125
      %p132 = scmp.eq.s32.totalorder %s29, 6
      %p133 = por %p131, %p132
      %p134 = scmp.ne.s32.totalorder %s125, %s126
      %p135 = scmp.eq.s32.totalorder %s29, 0
      %p136 = por %p134, %p135
      %p137 = scmp.ne.s32.totalorder %s125, %s126
      %p138 = scmp.eq.s32.totalorder %s30, 6
      %p139 = por %p137, %p138
      %p141 = scmp.ne.s32.totalorder %s126, %s140
      %p142 = scmp.eq.s32.totalorder %s30, 0
      %p143 = por %p141, %p142
      %s144 = ssub.s32 %s24, %s31
      %p145 = scmp.eq.s32.totalorder %s144, 0
      %s147 = sadd.s32 %s146, 1
      %s148 = scalar_select %p145, %s146, %s147
      %p151 = pneg %p145
      %p152 = scmp.eq.s32.totalorder %s24, 6
      %p153 = por %p151, %p152
      %p154 = scmp.ne.s32.totalorder %s146, %s149
      %p155 = scmp.eq.s32.totalorder %s24, 0
      %p156 = por %p154, %p155
      %p157 = scmp.ne.s32.totalorder %s146, %s149
      %p158 = scmp.eq.s32.totalorder %s29, 6
      %p159 = por %p157, %p158
      %p160 = scmp.ne.s32.totalorder %s149, %s150
      %p161 = scmp.eq.s32.totalorder %s29, 0
      %p162 = por %p160, %p161
      %p163 = scmp.ne.s32.totalorder %s149, %s150
      %p164 = scmp.eq.s32.totalorder %s30, 6
      %p165 = por %p163, %p164
      %p167 = scmp.ne.s32.totalorder %s150, %s166
      %p168 = scmp.eq.s32.totalorder %s30, 0
      %p169 = por %p167, %p168
      %s170 = ssub.s32 %s24, %s31
      %p171 = scmp.eq.s32.totalorder %s170, 0
      %s173 = sadd.s32 %s172, 1
      %s174 = scalar_select %p171, %s172, %s173
      %p177 = pneg %p171
      %p178 = scmp.eq.s32.totalorder %s24, 6
      %p179 = por %p177, %p178
      %p180 = scmp.ne.s32.totalorder %s172, %s175
      %p181 = scmp.eq.s32.totalorder %s24, 0
      %p182 = por %p180, %p181
      %p183 = scmp.ne.s32.totalorder %s172, %s175
      %p184 = scmp.eq.s32.totalorder %s29, 6
      %p185 = por %p183, %p184
      %p186 = scmp.ne.s32.totalorder %s175, %s176
      %p187 = scmp.eq.s32.totalorder %s29, 0
      %p188 = por %p186, %p187
      %p189 = scmp.ne.s32.totalorder %s175, %s176
      %p190 = scmp.eq.s32.totalorder %s30, 6
      %p191 = por %p189, %p190
      %p193 = scmp.ne.s32.totalorder %s176, %s192
      %p194 = scmp.eq.s32.totalorder %s30, 0
      %p195 = por %p193, %p194
      %s196 = ssub.s32 %s24, %s31
      %p197 = scmp.eq.s32.totalorder %s196, 0
      %s199 = sadd.s32 %s198, 1
      %s200 = scalar_select %p197, %s198, %s199
      %p203 = pneg %p197
      %p204 = scmp.eq.s32.totalorder %s24, 6
      %p205 = por %p203, %p204
      %p206 = scmp.ne.s32.totalorder %s198, %s201
      %p207 = scmp.eq.s32.totalorder %s24, 0
      %p208 = por %p206, %p207
      %p209 = scmp.ne.s32.totalorder %s198, %s201
      %p210 = scmp.eq.s32.totalorder %s29, 6
      %p211 = por %p209, %p210
      %p212 = scmp.ne.s32.totalorder %s201, %s202
      %p213 = scmp.eq.s32.totalorder %s29, 0
      %p214 = por %p212, %p213
      %p215 = scmp.ne.s32.totalorder %s201, %s202
      %p216 = scmp.eq.s32.totalorder %s30, 6
      %p217 = por %p215, %p216
      %p219 = scmp.ne.s32.totalorder %s202, %s218
      %p220 = scmp.eq.s32.totalorder %s30, 0
      %p221 = por %p219, %p220
      %s222 = sld [smem:[#allocation4 + %s24]]
      %s223 = sld [smem:[#allocation4 + %s31]]
      %s224 = ssub.s32 %s222, %s223
      %p225 = scmp.eq.s32.totalorder %s224, 0
      %s227 = sadd.s32 %s226, 1
      %s228 = scalar_select %p225, %s226, %s227
      %p231 = pneg %p225
      %p232 = scmp.eq.s32.totalorder %s24, 6
      %p233 = por %p231, %p232
      %p234 = scmp.ne.s32.totalorder %s226, %s229
      %p235 = scmp.eq.s32.totalorder %s24, 0
      %p236 = por %p234, %p235
      %p237 = scmp.ne.s32.totalorder %s226, %s229
      %p238 = scmp.eq.s32.totalorder %s29, 6
      %p239 = por %p237, %p238
      %p240 = scmp.ne.s32.totalorder %s229, %s230
      %p241 = scmp.eq.s32.totalorder %s29, 0
      %p242 = por %p240, %p241
      %p243 = scmp.ne.s32.totalorder %s229, %s230
      %p244 = scmp.eq.s32.totalorder %s30, 6
      %p245 = por %p243, %p244
      %p247 = scmp.ne.s32.totalorder %s230, %s246
      %p248 = scmp.eq.s32.totalorder %s30, 0
      %p249 = por %p247, %p248
      %p250 = scmp.le.s32.totalorder 1, %s24
      %p251 = scmp.lt.s32.totalorder %s24, 8
      %p252 = pnand %p250, %p251
      %p253 = pneg %p252
      // Predicated region
      $region9: #{tpu_custom_call.1} parent=5 // pred_check
        _
      $region10: #{tpu_custom_call.1} parent=5 // pred_check_branch
        %255 = sbr.rel (%p252) target = $region12
      $region11: #{tpu_custom_call.1} parent=5 // pred_region
        %s256 = ssub.s32 %s24, 1
        // Predicated region
        $region13: #{tpu_custom_call.1} parent=11 // pred_check
          %p257 = pneg %p73
        $region14: #{tpu_custom_call.1} parent=11 // pred_check_branch
          %259 = sbr.rel (%p257) target = $region16
        $region15: #{tpu_custom_call.1} parent=11 // pred_region
          _
        $region16: #{tpu_custom_call.1} parent=11 // pred_fallthru
          _
        // Predicated region
        $region17: #{tpu_custom_call.1} parent=11 // pred_check
          %p260 = pneg %p94
        $region18: #{tpu_custom_call.1} parent=11 // pred_check_branch
          %262 = sbr.rel (%p260) target = $region20
        $region19: #{tpu_custom_call.1} parent=11 // pred_region
          _
        $region20: #{tpu_custom_call.1} parent=11 // pred_fallthru
          _
        // Predicated region
        $region21: #{tpu_custom_call.1} parent=11 // pred_check
          %p263 = pneg %p115
        $region22: #{tpu_custom_call.1} parent=11 // pred_check_branch
          %265 = sbr.rel (%p263) target = $region24
        $region23: #{tpu_custom_call.1} parent=11 // pred_region
          _
        $region24: #{tpu_custom_call.1} parent=11 // pred_fallthru
          _
        // Predicated region
        $region25: #{tpu_custom_call.1} parent=11 // pred_check
          %p266 = pneg %p136
        $region26: #{tpu_custom_call.1} parent=11 // pred_check_branch
          %268 = sbr.rel (%p266) target = $region28
        $region27: #{tpu_custom_call.1} parent=11 // pred_region
          _
        $region28: #{tpu_custom_call.1} parent=11 // pred_fallthru
          _
      $region12: #{tpu_custom_call.1} parent=5 // pred_fallthru
        _
      %p269 = scmp.lt.s32.totalorder %s24, 7
      // Predicated region
      $region29: #{tpu_custom_call.1} parent=5 // pred_check
        %p270 = pneg %p269
      $region30: #{tpu_custom_call.1} parent=5 // pred_check_branch
        %272 = sbr.rel (%p270) target = $region32
      $region31: #{tpu_custom_call.1} parent=5 // pred_region
        // Predicated region
        $region33: #{tpu_custom_call.1} parent=31 // pred_check
          %p273 = pneg %p46
        $region34: #{tpu_custom_call.1} parent=31 // pred_check_branch
          %275 = sbr.rel (%p273) target = $region36
        $region35: #{tpu_custom_call.1} parent=31 // pred_region
          %s276 = sld [smem:[#allocation4 + %s24]]
          %p277 = scmp.lt.s32.totalorder %s276, 2
          %s278 = scalar_select %p277, %s276, 2
          %s279 = smul.addr %s278, 4
          %s280 = scalar_lea.vmem %s1, %s279
          %s281 = sld [smem:[#allocation4 + %s24]]
        $region36: #{tpu_custom_call.1} parent=31 // pred_fallthru
          _
        // Predicated region
        $region37: #{tpu_custom_call.1} parent=31 // pred_check
          %p282 = pneg %p156
        $region38: #{tpu_custom_call.1} parent=31 // pred_check_branch
          %284 = sbr.rel (%p282) target = $region40
        $region39: #{tpu_custom_call.1} parent=31 // pred_region
          %p285 = scmp.lt.s32.totalorder %s24, 6
          %s286 = scalar_select %p285, %s24, 6
          %s287 = smul.addr %s286, 8
          %s288 = scalar_lea.vmem %s6, %s287
        $region40: #{tpu_custom_call.1} parent=31 // pred_fallthru
          _
        // Predicated region
        $region41: #{tpu_custom_call.1} parent=31 // pred_check
          %p289 = pneg %p182
        $region42: #{tpu_custom_call.1} parent=31 // pred_check_branch
          %291 = sbr.rel (%p289) target = $region44
        $region43: #{tpu_custom_call.1} parent=31 // pred_region
          %p292 = scmp.lt.s32.totalorder %s24, 6
          %s293 = scalar_select %p292, %s24, 6
          %s294 = smul.addr %s293, 8
          %s295 = scalar_lea.vmem %s7, %s294
        $region44: #{tpu_custom_call.1} parent=31 // pred_fallthru
          _
        // Predicated region
        $region45: #{tpu_custom_call.1} parent=31 // pred_check
          %p296 = pneg %p208
        $region46: #{tpu_custom_call.1} parent=31 // pred_check_branch
          %298 = sbr.rel (%p296) target = $region48
        $region47: #{tpu_custom_call.1} parent=31 // pred_region
          %p299 = scmp.lt.s32.totalorder %s24, 6
          %s300 = scalar_select %p299, %s24, 6
          %s301 = smul.addr %s300, 8
          %s302 = scalar_lea.vmem %s8, %s301
        $region48: #{tpu_custom_call.1} parent=31 // pred_fallthru
          _
      $region32: #{tpu_custom_call.1} parent=5 // pred_fallthru
        _
      %p303 = scmp.le.s32.totalorder 1, %s24
      %p304 = scmp.lt.s32.totalorder %s24, 8
      %p305 = pnand %p303, %p304
      %p306 = pneg %p305
      // Predicated region
      $region49: #{tpu_custom_call.1} parent=5 // pred_check
        _
      $region50: #{tpu_custom_call.1} parent=5 // pred_check_branch
        %308 = sbr.rel (%p305) target = $region52
      $region51: #{tpu_custom_call.1} parent=5 // pred_region
        %s309 = ssub.s32 %s24, 1
        %s310 = sld [smem:[#allocation4 + %s29]]
        %p311 = scmp.lt.s32.totalorder %s310, 2
        %s312 = scalar_select %p311, %s310, 2
        %s313 = smul.addr %s312, 4
        %s314 = scalar_lea.vmem %s1, %s313
        %p315 = pneg %p52
        %p316 = pneg %p49
        %p317 = pneg %p73
        %p318 = pneg %p70
        %p319 = pneg %p94
        %p320 = pneg %p91
        %p321 = pneg %p115
        %p322 = pneg %p112
        %p323 = pneg %p136
        %p324 = pneg %p133
        %p325 = scmp.lt.s32.totalorder %s29, 6
        %s326 = scalar_select %p325, %s29, 6
        %s327 = smul.addr %s326, 8
        %s328 = scalar_lea.vmem %s6, %s327
        %p329 = pneg %p162
        %p330 = pneg %p159
        %p331 = scmp.lt.s32.totalorder %s29, 6
        %s332 = scalar_select %p331, %s29, 6
        %s333 = smul.addr %s332, 8
        %s334 = scalar_lea.vmem %s7, %s333
        %p335 = pneg %p188
        %p336 = pneg %p185
        %p337 = scmp.lt.s32.totalorder %s29, 6
        %s338 = scalar_select %p337, %s29, 6
        %s339 = smul.addr %s338, 8
        %s340 = scalar_lea.vmem %s8, %s339
        %p341 = pneg %p214
        %p342 = pneg %p211
        %p343 = pneg %p242
        %p344 = pneg %p239
        %s345 = sand.u32 %s229, 1
        %s346 = scalar_lea.sflag [#allocation6], %s345
        %s347 = sand.u32 %s229, 1
        %s348 = smul.addr %s347, 8
        %s349 = scalar_lea.vmem [#allocation5], %s348
        %s350 = sld [smem:[#allocation4 + %s29]]
        %p351 = scmp.lt.s32.totalorder %s350, 2
        %s352 = scalar_select %p351, %s350, 2
        %s353 = smul.addr %s352, 4
        %s354 = scalar_lea.vmem %s1, %s353
        %s355 = sld [smem:[#allocation4 + %s29]]
        %p356 = scmp.lt.s32.totalorder %s29, 6
        %s357 = scalar_select %p356, %s29, 6
        %s358 = smul.addr %s357, 8
        %s359 = scalar_lea.vmem %s6, %s358
        %p360 = scmp.lt.s32.totalorder %s29, 6
        %s361 = scalar_select %p360, %s29, 6
        %s362 = smul.addr %s361, 8
        %s363 = scalar_lea.vmem %s7, %s362
        %p364 = scmp.lt.s32.totalorder %s29, 6
        %s365 = scalar_select %p364, %s29, 6
        %s366 = smul.addr %s365, 8
        %s367 = scalar_lea.vmem %s8, %s366
        %s368 = sld [smem:[#allocation4 + %s29]]
        %s370 = sld [smem:[#allocation4 + %s29]]
        %s371 = ssub.s32 %s29, 1
        %p372 = scmp.gt.s32.totalorder %s371, 0
        %s373 = scalar_select %p372, %s371, 0
        %s374 = sld [smem:[#allocation4 + %s373]]
        %s375 = sadd.s32 %s29, 1
        %p376 = scmp.lt.s32.totalorder %s375, 6
        %s377 = scalar_select %p376, %s375, 6
        %s378 = sld [smem:[#allocation4 + %s377]]
        %p379 = scmp.eq.s32.totalorder %s29, 0
        %p380 = scmp.ne.s32.totalorder %s374, %s370
        %p381 = por %p379, %p380
        %p382 = scmp.eq.s32.totalorder %s29, 6
        %p383 = scmp.ne.s32.totalorder %s378, %s370
        %p384 = por %p382, %p383
        // Predicated region
        $region53: #{tpu_custom_call.1} parent=51 // pred_check
          %p385 = pneg %p381
        $region54: #{tpu_custom_call.1} parent=51 // pred_check_branch
          %387 = sbr.rel (%p385) target = $region56
        $region55: #{tpu_custom_call.1} parent=51 // pred_region
          %388 = vst [vmem:[#allocation2] sm:$0xff] 0.0
          %389 = vst [vmem:[#allocation2 + $0x8] sm:$0xff] 0.0
        $region56: #{tpu_custom_call.1} parent=51 // pred_fallthru
          _
        %v390 = vld [vmem:[%s363] sm:$0xff]
        %v391 = vld [vmem:[%s367] sm:$0xff]
        %s392 = smul.u32 %s370, 8
        %v393 = vlaneseq
        %v394 = vand.u32 %v393, 127
        %v395 = vstv %s392
        %v396 = vadd.s32 %v394, %v395
        %397 = vset.pattern.permute.xlu0 0
        %398 = vperm.xlu0 %397, %v391
        %v399 = vpop.permute.xlu0 %398
        %vm400 = vcmp.eq.s32.totalorder %v396, %v399
        %v401 = vsel %vm400, 1, 0
        %v402 = vcvt.s32.f32 %v401
        %v403 = vpack.c.bf16 %v402, %v402
        %v404 = vld [vmem:[%s354] sm:$0xf]
        %vm405 = vcmask 64512
        %v407 = vsel %vm405, %v403, 0
        %vm409 = vcmask 1043456
        %v411 = vsel %vm409, %v404, 0
        %413 = vmatprep.subr.bf16.mxu0 0
        %414 = vmatpush1.bf16.msra.mxu0 0
        %415 = vmatprep.subr.bf16.mxu0 0
        %416 = vmatpush1.bf16.msra.mxu0 0
        %417 = vmatprep.subr.bf16.mxu0 0
        %418 = vmatpush1.bf16.msra.mxu0 0
        %419 = vmatprep.subr.bf16.mxu0 0
        %420 = vmatpush1.bf16.msra.mxu0 0
        %421 = vmatprep.subr.bf16.mxu0 0
        %422 = vmatpush1.bf16.msra.mxu0 0
        %423 = vmatprep.subr.bf16.mxu0 0
        %424 = vmatpush1.bf16.msra.mxu0 0
        %425 = vmatprep.subr.bf16.mxu0 0
        %426 = vmatpush1.bf16.msra.mxu0 0
        %427 = vmatprep.subr.bf16.mxu0 0
        %428 = vmatpush1.bf16.msra.mxu0 %v411
        %429 = vmatprep.subr.bf16.mxu0 0
        %430 = vmatpush2.bf16.msra.mxu0 0
        %431 = vmatprep.subr.bf16.mxu0 0
        %432 = vmatpush2.bf16.msra.mxu0 0
        %433 = vmatprep.subr.bf16.mxu0 0
        %434 = vmatpush2.bf16.msra.mxu0 0
        %435 = vmatprep.subr.bf16.mxu0 0
        %436 = vmatpush2.bf16.msra.mxu0 0
        %437 = vmatprep.subr.bf16.mxu0 0
        %438 = vmatpush2.bf16.msra.mxu0 0
        %439 = vmatprep.subr.bf16.mxu0 0
        %440 = vmatpush2.bf16.msra.mxu0 0
        %441 = vmatprep.subr.bf16.mxu0 0
        %442 = vmatpush2.bf16.msra.mxu0 0
        %443 = vmatprep.subr.bf16.mxu0 0
        %444 = vmatpush2.bf16.msra.mxu0 0
        %445 = vmatprep.mubr.bf16.mxu0 0
        %446 = vmatmul.mubr.bf16.gmra.mxu0 %v407
        %v447 = vpop.f32.mrf.mxu0
        %v448 = vadd.f32 0.0, %v447
        %v449 = vpop.f32.mrf.mxu0
        %v450 = vpop.f32.mrf.mxu0
        %v451 = vpop.f32.mrf.mxu0
        %452 = vdwg.mxu0
        loop: start=0, step=1, limit=3
        $region57: #{tpu_custom_call.1} parent=51 // loop_pre_header
          _
        $region58: #{tpu_custom_call.1} parent=51 // loop_header
          %s454 = sphi 0, %s458
          %p455 = scmp.ge.s32.totalorder %s454, 3
          %v459 = vphi 0.0, %v532
          %v460 = vphi 0.0, %v533
        $region59: #{tpu_custom_call.1} parent=51 // loop_header_branch
          %457 = sbr.rel (%p455) target = $region63
        $region60: #{tpu_custom_call.1} parent=51 // loop_body
          %s461 = smul.u32 %s454, 8
          %v462 = vstv %s461
          %v463 = vadd.s32 %v394, %v462
          %464 = vset.pattern.permute.xlu0 0
          %465 = vperm.xlu0 %464, %v390
          %v466 = vpop.permute.xlu0 %465
          %vm467 = vcmp.eq.s32.totalorder %v463, %v466
          %v468 = vsel %vm467, 1, 0
          %v469 = vcvt.s32.f32 %v468
          %v470 = vpack.c.bf16 %v469, %v469
          %s471 = sshra.s32 %s461, 3
          %s472 = sand.u32 %s461, 7
          %s473 = smul.u32 %s471, 2
          %s474 = smul.addr %s473, 4
          %s475 = scalar_lea.vmem %s2, %s474
          %v476 = vld [vmem:[%s475] sm:$0xff]
          %v478 = vunpack.c.l.b16 %v476
          %v479 = vunpack.c.h.b16 %v476
          %v480 = vpack.c.b16 %v478, %v478
          %v481 = vpack.c.b16 %v479, %v479
          %v483 = vsel %vm405, %v470, 0
          %v486 = vsel %vm409, %v480, 0
          %v489 = vsel %vm409, %v481, 0
          %491 = vmatprep.subr.bf16.mxu0 0
          %492 = vmatpush1.bf16.msra.mxu0 0
          %493 = vmatprep.subr.bf16.mxu0 0
          %494 = vmatpush1.bf16.msra.mxu0 0
          %495 = vmatprep.subr.bf16.mxu0 0
          %496 = vmatpush1.bf16.msra.mxu0 0
          %497 = vmatprep.subr.bf16.mxu0 0
          %498 = vmatpush1.bf16.msra.mxu0 0
          %499 = vmatprep.subr.bf16.mxu0 0
          %500 = vmatpush1.bf16.msra.mxu0 0
          %501 = vmatprep.subr.bf16.mxu0 0
          %502 = vmatpush1.bf16.msra.mxu0 0
          %503 = vmatprep.subr.bf16.mxu0 0
          %504 = vmatpush1.bf16.msra.mxu0 0
          %505 = vmatprep.subr.bf16.mxu0 %v489
          %506 = vmatpush1.bf16.msra.mxu0 %v486
          %507 = vmatprep.subr.bf16.mxu0 0
          %508 = vmatpush2.bf16.msra.mxu0 0
          %509 = vmatprep.subr.bf16.mxu0 0
          %510 = vmatpush2.bf16.msra.mxu0 0
          %511 = vmatprep.subr.bf16.mxu0 0
          %512 = vmatpush2.bf16.msra.mxu0 0
          %513 = vmatprep.subr.bf16.mxu0 0
          %514 = vmatpush2.bf16.msra.mxu0 0
          %515 = vmatprep.subr.bf16.mxu0 0
          %516 = vmatpush2.bf16.msra.mxu0 0
          %517 = vmatprep.subr.bf16.mxu0 0
          %518 = vmatpush2.bf16.msra.mxu0 0
          %519 = vmatprep.subr.bf16.mxu0 0
          %520 = vmatpush2.bf16.msra.mxu0 0
          %521 = vmatprep.subr.bf16.mxu0 0
          %522 = vmatpush2.bf16.msra.mxu0 0
          %523 = vmatprep.mubr.bf16.mxu0 0
          %524 = vmatmul.mubr.bf16.gmra.mxu0 %v483
          %v525 = vpop.f32.mrf.mxu0
          %v526 = vadd.f32 0.0, %v525
          %v527 = vpop.f32.mrf.mxu0
          %v528 = vadd.f32 0.0, %v527
          %v529 = vpop.f32.mrf.mxu0
          %v530 = vpop.f32.mrf.mxu0
          %531 = vdwg.mxu0
          %v532 = vadd.f32 %v459, %v526
          %v533 = vadd.f32 %v460, %v528
        $region61: #{tpu_custom_call.1} parent=51 // loop_footer
          %s458 = sadd.s32 1, %s454
        $region62: #{tpu_custom_call.1} parent=51 // loop_footer_branch
          %453 = sbr.rel target = $region58
        $region63: #{tpu_custom_call.1} parent=51 // loop_exit
          _
        %v534 = vld [vmem:[%s359] sm:$0xff]
        %v535 = vld [vmem:[%s4] sm:$0x1]
        %537 = vset.pattern.permute.xlu0 0
        %538 = vperm.xlu0 %537, %v534
        %v539 = vpop.permute.xlu0 %538
        %v542 = vlaneseq
        %v543 = vshrl.u32 %v542, 7
        %v544 = vsub.s32 0, %v543
        %v545 = vrot.slane %v535, %v544
        %v547 = vmul.f32 %v539, %v545
        %v548 = vld [vmem:[%s5] sm:$0x1]
        %v550 = vlaneseq
        %v551 = vshrl.u32 %v550, 7
        %v552 = vsub.s32 0, %v551
        %v553 = vrot.slane %v548, %v552
        %v555 = vadd.f32 %v547, %v553
        %v556 = vmul.f32 %v459, %v448
        %v557 = vmul.f32 %v556, %v555
        %v558 = vld [vmem:[%s3] sm:$0xff]
        %v559 = vld [vmem:[%s3 + $0x8] sm:$0xff]
        %v560 = vld [vmem:[%s3 + $0x10] sm:$0xff]
        %v561 = vld [vmem:[%s3 + $0x18] sm:$0xff]
        %v562 = vld [vmem:[%s3 + $0x20] sm:$0xff]
        %v563 = vld [vmem:[%s3 + $0x28] sm:$0xff]
        %v564 = vld [vmem:[%s3 + $0x30] sm:$0xff]
        %v565 = vld [vmem:[%s3 + $0x38] sm:$0xff]
        %v566 = vld [vmem:[%s3 + $0x40] sm:$0xff]
        %v567 = vld [vmem:[%s3 + $0x48] sm:$0xff]
        %v568 = vld [vmem:[%s3 + $0x50] sm:$0xff]
        %v569 = vld [vmem:[%s3 + $0x58] sm:$0xff]
        %v570 = vld [vmem:[%s3 + $0x60] sm:$0xff]
        %v571 = vld [vmem:[%s3 + $0x68] sm:$0xff]
        %v572 = vld [vmem:[%s3 + $0x70] sm:$0xff]
        %v573 = vld [vmem:[%s3 + $0x78] sm:$0xff]
        %574 = vmatprep.subr.mxu0 0.0
        %575 = vmatpush1.msra.mxu0 %v573
        %576 = vmatprep.subr.mxu0 0.0
        %577 = vmatpush1.msra.mxu0 %v572
        %578 = vmatprep.subr.mxu0 0.0
        %579 = vmatpush1.msra.mxu0 %v571
        %580 = vmatprep.subr.mxu0 0.0
        %581 = vmatpush1.msra.mxu0 %v570
        %582 = vmatprep.subr.mxu0 0.0
        %583 = vmatpush1.msra.mxu0 %v569
        %584 = vmatprep.subr.mxu0 0.0
        %585 = vmatpush1.msra.mxu0 %v568
        %586 = vmatprep.subr.mxu0 0.0
        %587 = vmatpush1.msra.mxu0 %v567
        %588 = vmatprep.subr.mxu0 0.0
        %589 = vmatpush1.msra.mxu0 %v566
        %590 = vmatprep.subr.mxu0 0.0
        %591 = vmatpush1.msra.mxu0 %v565
        %592 = vmatprep.subr.mxu0 0.0
        %593 = vmatpush1.msra.mxu0 %v564
        %594 = vmatprep.subr.mxu0 0.0
        %595 = vmatpush1.msra.mxu0 %v563
        %596 = vmatprep.subr.mxu0 0.0
        %597 = vmatpush1.msra.mxu0 %v562
        %598 = vmatprep.subr.mxu0 0.0
        %599 = vmatpush1.msra.mxu0 %v561
        %600 = vmatprep.subr.mxu0 0.0
        %601 = vmatpush1.msra.mxu0 %v560
        %602 = vmatprep.subr.mxu0 0.0
        %603 = vmatpush1.msra.mxu0 %v559
        %604 = vmatprep.subr.mxu0 0.0
        %605 = vmatpush1.msra.mxu0 %v558
        %606 = vmatprep.subr.mxu0 0.0
        %607 = vmatpush2.msra.mxu0 0.0
        %608 = vmatprep.subr.mxu0 0.0
        %609 = vmatpush2.msra.mxu0 0.0
        %610 = vmatprep.subr.mxu0 0.0
        %611 = vmatpush2.msra.mxu0 0.0
        %612 = vmatprep.subr.mxu0 0.0
        %613 = vmatpush2.msra.mxu0 0.0
        %614 = vmatprep.subr.mxu0 0.0
        %615 = vmatpush2.msra.mxu0 0.0
        %616 = vmatprep.subr.mxu0 0.0
        %617 = vmatpush2.msra.mxu0 0.0
        %618 = vmatprep.subr.mxu0 0.0
        %619 = vmatpush2.msra.mxu0 0.0
        %620 = vmatprep.subr.mxu0 0.0
        %621 = vmatpush2.msra.mxu0 0.0
        %622 = vmatprep.subr.mxu0 0.0
        %623 = vmatpush2.msra.mxu0 0.0
        %624 = vmatprep.subr.mxu0 0.0
        %625 = vmatpush2.msra.mxu0 0.0
        %626 = vmatprep.subr.mxu0 0.0
        %627 = vmatpush2.msra.mxu0 0.0
        %628 = vmatprep.subr.mxu0 0.0
        %629 = vmatpush2.msra.mxu0 0.0
        %630 = vmatprep.subr.mxu0 0.0
        %631 = vmatpush2.msra.mxu0 0.0
        %632 = vmatprep.subr.mxu0 0.0
        %633 = vmatpush2.msra.mxu0 0.0
        %634 = vmatprep.subr.mxu0 0.0
        %635 = vmatpush2.msra.mxu0 0.0
        %636 = vmatprep.subr.mxu0 0.0
        %637 = vmatpush2.msra.mxu0 0.0
        %638 = vmatprep.mubr.f32.mxu0 0.0
        %639 = vmatmul.mubr.f32.gmra.mxu0 %v557
        %v640 = vpop.f32.mrf.mxu0
        %v641 = vadd.f32 0.0, %v640
        %v642 = vpop.f32.mrf.mxu0
        %643 = vdwg.mxu0
        %v644 = vmax.f32 %v641, -5.0
        %v645 = vmin.f32 %v644, 5.0
        %v646 = vmul.f32 %v645, 1.442695
        %v647 = vpow.pop %v646
        %v648 = vmul.f32 %v460, %v647
        %v649 = vpack.c.bf16 %v648, %v648
        %v650 = vpack.c.bf16 %v647, %v647
        %v651 = vld [vmem:[#allocation2] sm:$0xff]
        %v652 = vld [vmem:[#allocation2 + $0x8] sm:$0xff]
        %653 = vxpose.xlu0.c.b16.start [1/8] %v403, 128
        %654 = vxpose.xlu0.c.b16.cont [2/8] 0, 128
        %655 = vxpose.xlu0.c.b16.cont [3/8] 0, 128
        %656 = vxpose.xlu0.c.b16.cont [4/8] 0, 128
        %657 = vxpose.xlu0.c.b16.cont [5/8] 0, 128
        %658 = vxpose.xlu0.c.b16.cont [6/8] 0, 128
        %659 = vxpose.xlu0.c.b16.cont [7/8] 0, 128
        %660 = vxpose.xlu0.c.b16.end [8/8] 0, 128
        %v661 = vpop.trf.xlu0
        %v662 = vpop.trf.xlu0
        %v663 = vpop.trf.xlu0
        %v664 = vpop.trf.xlu0
        %v665 = vpop.trf.xlu0
        %v666 = vpop.trf.xlu0
        %v667 = vpop.trf.xlu0
        %v668 = vpop.trf.xlu0
        %v670 = vsel %vm405, %v661, 0
        %v673 = vsel %vm409, %v649, 0
        %v676 = vsel %vm409, %v650, 0
        %678 = vmatprep.subr.bf16.mxu0 0
        %679 = vmatpush1.bf16.msra.mxu0 0
        %680 = vmatprep.subr.bf16.mxu0 0
        %681 = vmatpush1.bf16.msra.mxu0 0
        %682 = vmatprep.subr.bf16.mxu0 0
        %683 = vmatpush1.bf16.msra.mxu0 0
        %684 = vmatprep.subr.bf16.mxu0 0
        %685 = vmatpush1.bf16.msra.mxu0 0
        %686 = vmatprep.subr.bf16.mxu0 0
        %687 = vmatpush1.bf16.msra.mxu0 0
        %688 = vmatprep.subr.bf16.mxu0 0
        %689 = vmatpush1.bf16.msra.mxu0 0
        %690 = vmatprep.subr.bf16.mxu0 0
        %691 = vmatpush1.bf16.msra.mxu0 0
        %692 = vmatprep.subr.bf16.mxu0 %v676
        %693 = vmatpush1.bf16.msra.mxu0 %v673
        %694 = vmatprep.subr.bf16.mxu0 0
        %695 = vmatpush2.bf16.msra.mxu0 0
        %696 = vmatprep.subr.bf16.mxu0 0
        %697 = vmatpush2.bf16.msra.mxu0 0
        %698 = vmatprep.subr.bf16.mxu0 0
        %699 = vmatpush2.bf16.msra.mxu0 0
        %700 = vmatprep.subr.bf16.mxu0 0
        %701 = vmatpush2.bf16.msra.mxu0 0
        %702 = vmatprep.subr.bf16.mxu0 0
        %703 = vmatpush2.bf16.msra.mxu0 0
        %704 = vmatprep.subr.bf16.mxu0 0
        %705 = vmatpush2.bf16.msra.mxu0 0
        %706 = vmatprep.subr.bf16.mxu0 0
        %707 = vmatpush2.bf16.msra.mxu0 0
        %708 = vmatprep.subr.bf16.mxu0 0
        %709 = vmatpush2.bf16.msra.mxu0 0
        %710 = vmatprep.mubr.bf16.mxu0 0
        %711 = vmatmul.mubr.bf16.gmra.mxu0 %v670
        %v712 = vpop.f32.mrf.mxu0
        %v713 = vadd.f32 0.0, %v712
        %v714 = vpop.f32.mrf.mxu0
        %v715 = vadd.f32 0.0, %v714
        %v716 = vpop.f32.mrf.mxu0
        %v717 = vpop.f32.mrf.mxu0
        %718 = vdwg.mxu0
        %v719 = vadd.f32 %v651, %v713
        %v720 = vadd.f32 %v652, %v715
        %721 = vst [vmem:[#allocation2] sm:$0xff] %v719
        %722 = vst [vmem:[#allocation2 + $0x8] sm:$0xff] %v720
        // Predicated region
        $region64: #{tpu_custom_call.1} parent=51 // pred_check
          %p723 = pneg %p384
        $region65: #{tpu_custom_call.1} parent=51 // pred_check_branch
          %725 = sbr.rel (%p723) target = $region67
        $region66: #{tpu_custom_call.1} parent=51 // pred_region
          %v726 = vld [vmem:[#allocation2] sm:$0xff]
          %v727 = vld [vmem:[#allocation2 + $0x8] sm:$0xff]
          %v728 = vadd.f32 %v727, 1e-06
          %v729 = vrcp.pop %v728
          %v730 = vmul.f32 %v726, %v729
          %731 = vst [vmem:[%s349] sm:$0xff] %v730
        $region67: #{tpu_custom_call.1} parent=51 // pred_fallthru
          _
        %s732 = sand.u32 %s229, 1
        %s733 = scalar_lea.sflag [#allocation6], %s732
        %s734 = sand.u32 %s229, 1
        %s735 = smul.addr %s734, 8
        %s736 = scalar_lea.vmem [#allocation5], %s735
        // Predicated region
        $region68: #{tpu_custom_call.1} parent=51 // pred_check
          %p737 = pneg %p239
        $region69: #{tpu_custom_call.1} parent=51 // pred_check_branch
          %739 = sbr.rel (%p737) target = $region71
        $region70: #{tpu_custom_call.1} parent=51 // pred_region
          %s740 = sld [smem:[#allocation4 + %s29]]
          %s742 = ssub.s32 128, 128
          %743 = vsyncadd %s733, %s742
          %s744 = smul.addr %s740, 128
          %s745 = scalar_lea.hbm %s9, %s744
          %s747 = sshll.u32 %s736, 4
          %s748 = int_to_ptr.vmem [resolvable:$true] %s747
          %750 = dma.vmem_to_hbm [thread:$0]  %s748, 128, %s745, %s733
        $region71: #{tpu_custom_call.1} parent=51 // pred_fallthru
          _
      $region52: #{tpu_custom_call.1} parent=5 // pred_fallthru
        _
      %p751 = scmp.le.s32.totalorder 2, %s24
      // Predicated region
      $region72: #{tpu_custom_call.1} parent=5 // pred_check
        %p752 = pneg %p751
      $region73: #{tpu_custom_call.1} parent=5 // pred_check_branch
        %754 = sbr.rel (%p752) target = $region75
      $region74: #{tpu_custom_call.1} parent=5 // pred_region
        %s755 = ssub.s32 %s24, 2
        // Predicated region
        $region76: #{tpu_custom_call.1} parent=74 // pred_check
          %p756 = pneg %p245
        $region77: #{tpu_custom_call.1} parent=74 // pred_check_branch
          %758 = sbr.rel (%p756) target = $region79
        $region78: #{tpu_custom_call.1} parent=74 // pred_region
          %s759 = sand.u32 %s230, 1
          %s760 = scalar_lea.sflag [#allocation6], %s759
          %s761 = sand.u32 %s230, 1
          %s762 = smul.addr %s761, 8
          %s763 = scalar_lea.vmem [#allocation5], %s762
          %764 = dma.done %s760, 128
        $region79: #{tpu_custom_call.1} parent=74 // pred_fallthru
          _
      $region75: #{tpu_custom_call.1} parent=5 // pred_fallthru
        _
    $region6: #{tpu_custom_call.1} parent=1 // loop_footer
      %s28 = sadd.s32 1, %s24
    $region7: #{tpu_custom_call.1} parent=1 // loop_footer_branch
      %23 = sbr.rel target = $region3
    $region8: #{tpu_custom_call.1} parent=1 // loop_exit
      _
    %765 = vsyncpa [#allocation6], 1
    %s766 = scalar_lea.sflag [#allocation6], 1
    %767 = vsyncpa %s766, 1

</llo_original>
